<compile_context>
chip_gen: v6e
topology: v6e:2x2x1
jax: 0.10.0
libtpu: 0.0.40
codegen_flags: <defaults>
</compile_context>

<pallas_src>
import jax
import jax.numpy as jnp
from jax import lax
from jax.experimental import pallas as pl
from jax.experimental.pallas import tpu as pltpu

EPS = 1e-5


def _conv_band(w_hwio, W):
    """HWIO (3,3,Cin,Cout) -> K-stacked band matrix (3*W*Cin, W*Cout).

    Row [dy*W*Cin + u*Cin + ci], col [w*Cout + co] holds w_hwio[dy, dx, ci, co]
    with u = w + dx - 1.  Out-of-range (w, dx) taps are simply absent (zero
    rows), which is exactly SAME zero padding in width -> the im2col LHS needs
    no width-halo lanes at all."""
    kh, kw, cin, cout = w_hwio.shape
    k_flat = w_hwio.reshape(kh, kw * cin, cout)                    # (3, 3*cin, cout)
    cols = []
    for w in range(W):
        lo = w * cin
        hi = (W + 2) * cin - lo - kw * cin
        cols.append(jnp.pad(k_flat, ((0, 0), (lo, hi), (0, 0))))   # band at padded-col block w
    b_pad = jnp.concatenate(cols, axis=-1)                         # (3, (W+2)*cin, W*cout)
    band = b_pad[:, cin:(W + 1) * cin, :]                          # drop left/right zero-pad rows
    return band.reshape(kh * W * cin, W * cout)                    # K-stacked over dy


def _make_kernel(N, H, W, CIN, COUT):
    M = N * H
    WCIN, WCOUT = W * CIN, W * COUT
    K1, K2 = 3 * WCIN, 3 * WCOUT
    inv_cnt = 1.0 / float(N * H * W)

    def lane_allreduce(row):
        # Sum over the W lane-groups of size COUT of a (1, W*COUT) row; result is
        # broadcast back to every (w, c) lane position.  XLU lane rotations only
        # (no MXU selector matmul): log2(W) doubling steps for power-of-two W.
        if W & (W - 1) == 0:
            s = row
            shift = COUT
            while shift < WCOUT:
                s = s + pltpu.roll(s, shift, 1)
                shift *= 2
            return s
        s = row
        for k in range(1, W):
            s = s + pltpu.roll(row, k * COUT, 1)
        return s

    def batchnorm(y, g_row, b_row):
        # PyTorch training-mode BN (batch stats, biased variance), all f32.
        # Row-sum FIRST (sublane reduce of the (M, W*COUT) tensor), then the tiny
        # W-group lane reduction -- ~100x less reduction work than selector
        # matmuls on the full tensor, and numerically identical (two-pass d*d).
        mean = lane_allreduce(jnp.sum(y, axis=0, keepdims=True)) * inv_cnt
        d = y - mean
        var = lane_allreduce(jnp.sum(d * d, axis=0, keepdims=True)) * inv_cnt
        return d * lax.rsqrt(var + EPS) * g_row + b_row

    def kernel(x_ref, w1_ref, w2_ref, ws_ref, pc_ref, out_ref, im1_ref, im2_ref):
        # packed per-channel rows (one vreg): b1,g1,be1,b2,g2,be2,bs
        b1 = pc_ref[0:1, :]
        g1 = pc_ref[1:2, :]
        be1 = pc_ref[2:3, :]
        b2 = pc_ref[3:4, :]
        g2 = pc_ref[4:5, :]
        be2 = pc_ref[5:6, :]
        bs = pc_ref[6:7, :]

        x = x_ref[...]                                             # (N, H, W*CIN) f32

        # ---- conv1 im2col: K-stack the three dy windows along the lane axis ----
        # Only the two true height-halo rows per image are zeroed; the interior
        # stores start at lane offsets 0 / WCIN / 2*WCIN (no width halo).
        im1_ref[:, 0:1, 0:WCIN] = jnp.zeros((N, 1, WCIN), jnp.float32)           # dy=0 halo (h=0)
        im1_ref[:, 1:H, 0:WCIN] = x[:, 0:H - 1, :]                               # dy=0
        im1_ref[:, :, WCIN:2 * WCIN] = x                                         # dy=1
        im1_ref[:, 0:H - 1, 2 * WCIN:K1] = x[:, 1:H, :]                          # dy=2
        im1_ref[:, H - 1:H, 2 * WCIN:K1] = jnp.zeros((N, 1, WCIN), jnp.float32)  # dy=2 halo (h=H-1)

        lhs1 = im1_ref[...].reshape(M, K1).astype(jnp.bfloat16)    # bf16 MXU operand
        y1 = jnp.dot(lhs1, w1_ref[...], preferred_element_type=jnp.float32) + b1
        h1 = jnp.maximum(batchnorm(y1, g1, be1), 0.0)              # (M, W*COUT) f32

        # ---- conv2 im2col of h1 (h1 never leaves VMEM) ----
        h1n = h1.reshape(N, H, WCOUT)
        im2_ref[:, 0:1, 0:WCOUT] = jnp.zeros((N, 1, WCOUT), jnp.float32)
        im2_ref[:, 1:H, 0:WCOUT] = h1n[:, 0:H - 1, :]
        im2_ref[:, :, WCOUT:2 * WCOUT] = h1n
        im2_ref[:, 0:H - 1, 2 * WCOUT:K2] = h1n[:, 1:H, :]
        im2_ref[:, H - 1:H, 2 * WCOUT:K2] = jnp.zeros((N, 1, WCOUT), jnp.float32)

        lhs2 = im2_ref[...].reshape(M, K2).astype(jnp.bfloat16)
        y2 = batchnorm(
            jnp.dot(lhs2, w2_ref[...], preferred_element_type=jnp.float32) + b2,
            g2, be2)

        # ---- 1x1 shortcut (block-diagonal matmul) + residual add + ReLU ----
        sc = jnp.dot(x.reshape(M, WCIN).astype(jnp.bfloat16), ws_ref[...],
                     preferred_element_type=jnp.float32) + bs
        out_ref[...] = jnp.maximum(y2 + sc, 0.0)

    return kernel


def residual_block(x_nhwc, params):
    """x_nhwc: (N,H,W,Cin) float32. Returns (N,H,W,Cout) float32."""
    (w1, b1, g1, be1, w2, b2, g2, be2, ws, bs) = params
    n, h, w, cin = x_nhwc.shape
    cout = w1.shape[-1]
    wcout = w * cout

    # --- one-time weight preprocessing in plain JAX (no activation traffic) ---
    # Matmul operands in bf16 (MXU-native on v5e/v6e/v7x); accumulation stays f32.
    B1 = _conv_band(w1, w).astype(jnp.bfloat16)                    # (3*W*Cin,  W*Cout)
    B2 = _conv_band(w2, w).astype(jnp.bfloat16)                    # (3*W*Cout, W*Cout)
    Bs = jnp.kron(jnp.eye(w, dtype=jnp.float32), ws).astype(jnp.bfloat16)  # (W*Cin, W*Cout)
    tile_row = lambda v: jnp.tile(v, w)                            # per-channel -> (W*Cout,) lane row
    pc = jnp.stack([tile_row(b1), tile_row(g1), tile_row(be1),
                    tile_row(b2), tile_row(g2), tile_row(be2),
                    tile_row(bs), jnp.zeros((wcout,), jnp.float32)])  # (8, W*Cout): one vreg, one DMA

    x3 = x_nhwc.reshape(n, h, w * cin)                             # free, lane-dense presentation

    flops = 2 * n * h * (3 * w * cin + 3 * w * cout + cin) * wcout
    bytes_accessed = (x3.size * 4 + (B1.size + B2.size + Bs.size) * 2
                      + pc.size * 4 + n * h * wcout * 4)

    kernel = _make_kernel(n, h, w, cin, cout)
    vmem = pl.BlockSpec(memory_space=pltpu.MemorySpace.VMEM)
    out2d = pl.pallas_call(
        kernel,
        out_shape=jax.ShapeDtypeStruct((n * h, wcout), jnp.float32),
        in_specs=[vmem] * 5,
        out_specs=vmem,
        scratch_shapes=[
            pltpu.VMEM((n, h, 3 * w * cin), jnp.float32),          # conv1 K-stacked im2col
            pltpu.VMEM((n, h, 3 * w * cout), jnp.float32),         # conv2 im2col (h1 never hits HBM)
        ],
        cost_estimate=pl.CostEstimate(flops=flops, transcendentals=4 * wcout,
                                      bytes_accessed=bytes_accessed),
    )(x3, B1, B2, Bs, pc)
    return out2d.reshape(n, h, w, cout)                            # free reshape back to NHWC


def reference(x, params):
    """Pure-JAX f32 reference of the PyTorch forward (NHWC)."""
    (w1, b1, g1, be1, w2, b2, g2, be2, ws, bs) = params
    dn = ('NHWC', 'HWIO', 'NHWC')

    def conv3(a, w, b):
        return lax.conv_general_dilated(a, w, (1, 1), 'SAME',
                                        dimension_numbers=dn) + b

    def bn(y, g, be):
        m = jnp.mean(y, axis=(0, 1, 2), keepdims=True)
        v = jnp.mean((y - m) ** 2, axis=(0, 1, 2), keepdims=True)
        return (y - m) * lax.rsqrt(v + EPS) * g + be

    h1 = jax.nn.relu(bn(conv3(x, w1, b1), g1, be1))
    y2 = bn(conv3(h1, w2, b2), g2, be2)
    sc = jnp.einsum('nhwc,co->nhwo', x, ws) + bs
    return jax.nn.relu(y2 + sc)


if __name__ == "__main__":
    N, H, W = 2, 16, 16
    CIN, COUT = 4, 8          # in_channels != out_channels -> 1x1 conv shortcut

    key = jax.random.PRNGKey(0)
    ks = jax.random.split(key, 11)

    # PyTorch-style NCHW input, permuted to the kernel's NHWC layout.
    x_nchw = jax.random.normal(ks[0], (N, CIN, H, W), jnp.float32)
    x = jnp.transpose(x_nchw, (0, 2, 3, 1))

    # Deterministic synthetic parameters (shapes follow the nn.Module __init__).
    w1 = 0.2 * jax.random.normal(ks[1], (3, 3, CIN, COUT), jnp.float32)   # conv1 (HWIO)
    b1 = 0.1 * jax.random.normal(ks[2], (COUT,), jnp.float32)
    g1 = 1.0 + 0.1 * jax.random.normal(ks[3], (COUT,), jnp.float32)       # bn1 gamma
    be1 = 0.1 * jax.random.normal(ks[4], (COUT,), jnp.float32)            # bn1 beta
    w2 = 0.2 * jax.random.normal(ks[5], (3, 3, COUT, COUT), jnp.float32)  # conv2 (HWIO)
    b2 = 0.1 * jax.random.normal(ks[6], (COUT,), jnp.float32)
    g2 = 1.0 + 0.1 * jax.random.normal(ks[7], (COUT,), jnp.float32)       # bn2 gamma
    be2 = 0.1 * jax.random.normal(ks[8], (COUT,), jnp.float32)            # bn2 beta
    ws = 0.2 * jax.random.normal(ks[9], (CIN, COUT), jnp.float32)         # 1x1 shortcut
    bs = 0.1 * jax.random.normal(ks[10], (COUT,), jnp.float32)

    params = (w1, b1, g1, be1, w2, b2, g2, be2, ws, bs)

    out = jax.block_until_ready(residual_block(x, params))
    ref = reference(x, params)

    assert out.shape == (N, H, W, COUT)
    err = float(jnp.max(jnp.abs(out - ref)))
    # bf16 MXU operands (per perf review) vs. the f32 reference: observed error
    # is O(1e-2); tolerance relaxed accordingly.
    assert err < 5e-2, f"max abs err {err}"
    print("KERNEL_OK")
</pallas_src>

<mosaic_0001>
module attributes {stable_mosaic.version = 11 : i64} {
  func.func @kernel(%arg0: memref<2x16x64xf32, #tpu.memory_space<vmem>>, %arg1: memref<192x128xbf16, #tpu.memory_space<vmem>>, %arg2: memref<384x128xbf16, #tpu.memory_space<vmem>>, %arg3: memref<64x128xbf16, #tpu.memory_space<vmem>>, %arg4: memref<8x128xf32, #tpu.memory_space<vmem>>, %arg5: memref<32x128xf32, #tpu.memory_space<vmem>>, %arg6: memref<2x16x192xf32, #tpu.memory_space<vmem>>, %arg7: memref<2x16x384xf32, #tpu.memory_space<vmem>>) attributes {dimension_semantics = [], scalar_prefetch = 0 : i64, scratch_operands = 2 : i64, tpu.core_type = #tpu.core_type<tc>} {
    %c0 = arith.constant 0 : index
    %c0_0 = arith.constant 0 : index
    %0 = vector.load %arg4[%c0, %c0_0] : memref<8x128xf32, #tpu.memory_space<vmem>>, vector<1x128xf32>
    %c1 = arith.constant 1 : index
    %c0_1 = arith.constant 0 : index
    %1 = vector.load %arg4[%c1, %c0_1] : memref<8x128xf32, #tpu.memory_space<vmem>>, vector<1x128xf32>
    %c2 = arith.constant 2 : index
    %c0_2 = arith.constant 0 : index
    %2 = vector.load %arg4[%c2, %c0_2] : memref<8x128xf32, #tpu.memory_space<vmem>>, vector<1x128xf32>
    %c3 = arith.constant 3 : index
    %c0_3 = arith.constant 0 : index
    %3 = vector.load %arg4[%c3, %c0_3] : memref<8x128xf32, #tpu.memory_space<vmem>>, vector<1x128xf32>
    %c4 = arith.constant 4 : index
    %c0_4 = arith.constant 0 : index
    %4 = vector.load %arg4[%c4, %c0_4] : memref<8x128xf32, #tpu.memory_space<vmem>>, vector<1x128xf32>
    %c5 = arith.constant 5 : index
    %c0_5 = arith.constant 0 : index
    %5 = vector.load %arg4[%c5, %c0_5] : memref<8x128xf32, #tpu.memory_space<vmem>>, vector<1x128xf32>
    %c6 = arith.constant 6 : index
    %c0_6 = arith.constant 0 : index
    %6 = vector.load %arg4[%c6, %c0_6] : memref<8x128xf32, #tpu.memory_space<vmem>>, vector<1x128xf32>
    %c0_7 = arith.constant 0 : index
    %c0_8 = arith.constant 0 : index
    %c0_9 = arith.constant 0 : index
    %7 = vector.load %arg0[%c0_7, %c0_8, %c0_9] : memref<2x16x64xf32, #tpu.memory_space<vmem>>, vector<2x16x64xf32>
    %cst = arith.constant 0.000000e+00 : f32
    %8 = vector.broadcast %cst : f32 to vector<2x1x64xf32>
    %c0_10 = arith.constant 0 : index
    %c0_11 = arith.constant 0 : index
    %c0_12 = arith.constant 0 : index
    %9 = vector.load %arg6[%c0_10, %c0_11, %c0_12] : memref<2x16x192xf32, #tpu.memory_space<vmem>>, vector<2x1x64xf32>
    tpu.vector_store %arg6[%c0_10, %c0_11, %c0_12], %8 {strides = array<i32>} : memref<2x16x192xf32, #tpu.memory_space<vmem>>, vector<2x1x64xf32>,
    %10 = vector.extract_strided_slice %7 {offsets = [0, 0, 0], sizes = [2, 15, 64], strides = [1, 1, 1]} : vector<2x16x64xf32> to vector<2x15x64xf32>
    %c0_13 = arith.constant 0 : index
    %c1_14 = arith.constant 1 : index
    %c0_15 = arith.constant 0 : index
    %11 = vector.load %arg6[%c0_13, %c1_14, %c0_15] : memref<2x16x192xf32, #tpu.memory_space<vmem>>, vector<2x15x64xf32>
    tpu.vector_store %arg6[%c0_13, %c1_14, %c0_15], %10 {strides = array<i32>} : memref<2x16x192xf32, #tpu.memory_space<vmem>>, vector<2x15x64xf32>,
    %c0_16 = arith.constant 0 : index
    %c0_17 = arith.constant 0 : index
    %c64 = arith.constant 64 : index
    %12 = vector.load %arg6[%c0_16, %c0_17, %c64] : memref<2x16x192xf32, #tpu.memory_space<vmem>>, vector<2x16x64xf32>
    tpu.vector_store %arg6[%c0_16, %c0_17, %c64], %7 {strides = array<i32>} : memref<2x16x192xf32, #tpu.memory_space<vmem>>, vector<2x16x64xf32>,
    %13 = vector.extract_strided_slice %7 {offsets = [0, 1, 0], sizes = [2, 15, 64], strides = [1, 1, 1]} : vector<2x16x64xf32> to vector<2x15x64xf32>
    %c0_18 = arith.constant 0 : index
    %c0_19 = arith.constant 0 : index
    %c128 = arith.constant 128 : index
    %14 = vector.load %arg6[%c0_18, %c0_19, %c128] : memref<2x16x192xf32, #tpu.memory_space<vmem>>, vector<2x15x64xf32>
    tpu.vector_store %arg6[%c0_18, %c0_19, %c128], %13 {strides = array<i32>} : memref<2x16x192xf32, #tpu.memory_space<vmem>>, vector<2x15x64xf32>,
    %cst_20 = arith.constant 0.000000e+00 : f32
    %15 = vector.broadcast %cst_20 : f32 to vector<2x1x64xf32>
    %c0_21 = arith.constant 0 : index
    %c15 = arith.constant 15 : index
    %c128_22 = arith.constant 128 : index
    %16 = vector.load %arg6[%c0_21, %c15, %c128_22] : memref<2x16x192xf32, #tpu.memory_space<vmem>>, vector<2x1x64xf32>
    tpu.vector_store %arg6[%c0_21, %c15, %c128_22], %15 {strides = array<i32>} : memref<2x16x192xf32, #tpu.memory_space<vmem>>, vector<2x1x64xf32>,
    %c0_23 = arith.constant 0 : index
    %c0_24 = arith.constant 0 : index
    %c0_25 = arith.constant 0 : index
    %17 = vector.load %arg6[%c0_23, %c0_24, %c0_25] : memref<2x16x192xf32, #tpu.memory_space<vmem>>, vector<2x16x192xf32>
    %18 = vector.shape_cast %17 : vector<2x16x192xf32> to vector<32x192xf32>
    %19 = arith.truncf %18 : vector<32x192xf32> to vector<32x192xbf16>
    %c0_26 = arith.constant 0 : index
    %c0_27 = arith.constant 0 : index
    %20 = vector.load %arg1[%c0_26, %c0_27] : memref<192x128xbf16, #tpu.memory_space<vmem>>, vector<192x128xbf16>
    %cst_28 = arith.constant dense<0.000000e+00> : vector<32x128xf32>
    %21 = tpu.matmul %19, %20, %cst_28 {dimension_numbers = #tpu.dot_dimension_numbers<[1], [0], [0], [1], [0, 0, 1, 1], [], []>} : vector<32x192xbf16>, vector<192x128xbf16>, vector<32x128xf32> -> vector<32x128xf32>
    %22 = vector.broadcast %0 : vector<1x128xf32> to vector<32x128xf32>
    %23 = arith.addf %21, %22 : vector<32x128xf32>
    %cst_29 = arith.constant dense<0.000000e+00> : vector<128xf32>
    %24 = vector.multi_reduction <add>, %23, %cst_29 [0] : vector<32x128xf32> to vector<128xf32>
    %25 = vector.shape_cast %24 : vector<128xf32> to vector<1x128xf32>
    %c8_i32 = arith.constant 8 : i32
    %26 = tpu.dynamic_rotate %25 by %c8_i32 dim 1 : vector<1x128xf32>, i32 -> vector<1x128xf32>
    %27 = arith.addf %25, %26 : vector<1x128xf32>
    %c16_i32 = arith.constant 16 : i32
    %28 = tpu.dynamic_rotate %27 by %c16_i32 dim 1 : vector<1x128xf32>, i32 -> vector<1x128xf32>
    %29 = arith.addf %27, %28 : vector<1x128xf32>
    %c32_i32 = arith.constant 32 : i32
    %30 = tpu.dynamic_rotate %29 by %c32_i32 dim 1 : vector<1x128xf32>, i32 -> vector<1x128xf32>
    %31 = arith.addf %29, %30 : vector<1x128xf32>
    %c64_i32 = arith.constant 64 : i32
    %32 = tpu.dynamic_rotate %31 by %c64_i32 dim 1 : vector<1x128xf32>, i32 -> vector<1x128xf32>
    %33 = arith.addf %31, %32 : vector<1x128xf32>
    %cst_30 = arith.constant 0.001953125 : f32
    %34 = vector.broadcast %cst_30 : f32 to vector<1x128xf32>
    %35 = arith.mulf %33, %34 : vector<1x128xf32>
    %36 = vector.broadcast %35 : vector<1x128xf32> to vector<32x128xf32>
    %37 = arith.subf %23, %36 : vector<32x128xf32>
    %38 = arith.mulf %37, %37 : vector<32x128xf32>
    %cst_31 = arith.constant dense<0.000000e+00> : vector<128xf32>
    %39 = vector.multi_reduction <add>, %38, %cst_31 [0] : vector<32x128xf32> to vector<128xf32>
    %40 = vector.shape_cast %39 : vector<128xf32> to vector<1x128xf32>
    %c8_i32_32 = arith.constant 8 : i32
    %41 = tpu.dynamic_rotate %40 by %c8_i32_32 dim 1 : vector<1x128xf32>, i32 -> vector<1x128xf32>
    %42 = arith.addf %40, %41 : vector<1x128xf32>
    %c16_i32_33 = arith.constant 16 : i32
    %43 = tpu.dynamic_rotate %42 by %c16_i32_33 dim 1 : vector<1x128xf32>, i32 -> vector<1x128xf32>
    %44 = arith.addf %42, %43 : vector<1x128xf32>
    %c32_i32_34 = arith.constant 32 : i32
    %45 = tpu.dynamic_rotate %44 by %c32_i32_34 dim 1 : vector<1x128xf32>, i32 -> vector<1x128xf32>
    %46 = arith.addf %44, %45 : vector<1x128xf32>
    %c64_i32_35 = arith.constant 64 : i32
    %47 = tpu.dynamic_rotate %46 by %c64_i32_35 dim 1 : vector<1x128xf32>, i32 -> vector<1x128xf32>
    %48 = arith.addf %46, %47 : vector<1x128xf32>
    %cst_36 = arith.constant 0.001953125 : f32
    %49 = vector.broadcast %cst_36 : f32 to vector<1x128xf32>
    %50 = arith.mulf %48, %49 : vector<1x128xf32>
    %cst_37 = arith.constant 9.99999974E-6 : f32
    %51 = vector.broadcast %cst_37 : f32 to vector<1x128xf32>
    %52 = arith.addf %50, %51 : vector<1x128xf32>
    %53 = math.rsqrt %52 : vector<1x128xf32>
    %54 = vector.broadcast %53 : vector<1x128xf32> to vector<32x128xf32>
    %55 = arith.mulf %37, %54 : vector<32x128xf32>
    %56 = vector.broadcast %1 : vector<1x128xf32> to vector<32x128xf32>
    %57 = arith.mulf %55, %56 : vector<32x128xf32>
    %58 = vector.broadcast %2 : vector<1x128xf32> to vector<32x128xf32>
    %59 = arith.addf %57, %58 : vector<32x128xf32>
    %cst_38 = arith.constant 0.000000e+00 : f32
    %60 = vector.broadcast %cst_38 : f32 to vector<32x128xf32>
    %61 = arith.maximumf %59, %60 : vector<32x128xf32>
    %62 = vector.shape_cast %61 : vector<32x128xf32> to vector<2x16x128xf32>
    %cst_39 = arith.constant 0.000000e+00 : f32
    %63 = vector.broadcast %cst_39 : f32 to vector<2x1x128xf32>
    %c0_40 = arith.constant 0 : index
    %c0_41 = arith.constant 0 : index
    %c0_42 = arith.constant 0 : index
    %64 = vector.load %arg7[%c0_40, %c0_41, %c0_42] : memref<2x16x384xf32, #tpu.memory_space<vmem>>, vector<2x1x128xf32>
    tpu.vector_store %arg7[%c0_40, %c0_41, %c0_42], %63 {strides = array<i32>} : memref<2x16x384xf32, #tpu.memory_space<vmem>>, vector<2x1x128xf32>,
    %65 = vector.extract_strided_slice %62 {offsets = [0, 0, 0], sizes = [2, 15, 128], strides = [1, 1, 1]} : vector<2x16x128xf32> to vector<2x15x128xf32>
    %c0_43 = arith.constant 0 : index
    %c1_44 = arith.constant 1 : index
    %c0_45 = arith.constant 0 : index
    %66 = vector.load %arg7[%c0_43, %c1_44, %c0_45] : memref<2x16x384xf32, #tpu.memory_space<vmem>>, vector<2x15x128xf32>
    tpu.vector_store %arg7[%c0_43, %c1_44, %c0_45], %65 {strides = array<i32>} : memref<2x16x384xf32, #tpu.memory_space<vmem>>, vector<2x15x128xf32>,
    %c0_46 = arith.constant 0 : index
    %c0_47 = arith.constant 0 : index
    %c128_48 = arith.constant 128 : index
    %67 = vector.load %arg7[%c0_46, %c0_47, %c128_48] : memref<2x16x384xf32, #tpu.memory_space<vmem>>, vector<2x16x128xf32>
    tpu.vector_store %arg7[%c0_46, %c0_47, %c128_48], %62 {strides = array<i32>} : memref<2x16x384xf32, #tpu.memory_space<vmem>>, vector<2x16x128xf32>,
    %68 = vector.extract_strided_slice %62 {offsets = [0, 1, 0], sizes = [2, 15, 128], strides = [1, 1, 1]} : vector<2x16x128xf32> to vector<2x15x128xf32>
    %c0_49 = arith.constant 0 : index
    %c0_50 = arith.constant 0 : index
    %c256 = arith.constant 256 : index
    %69 = vector.load %arg7[%c0_49, %c0_50, %c256] : memref<2x16x384xf32, #tpu.memory_space<vmem>>, vector<2x15x128xf32>
    tpu.vector_store %arg7[%c0_49, %c0_50, %c256], %68 {strides = array<i32>} : memref<2x16x384xf32, #tpu.memory_space<vmem>>, vector<2x15x128xf32>,
    %cst_51 = arith.constant 0.000000e+00 : f32
    %70 = vector.broadcast %cst_51 : f32 to vector<2x1x128xf32>
    %c0_52 = arith.constant 0 : index
    %c15_53 = arith.constant 15 : index
    %c256_54 = arith.constant 256 : index
    %71 = vector.load %arg7[%c0_52, %c15_53, %c256_54] : memref<2x16x384xf32, #tpu.memory_space<vmem>>, vector<2x1x128xf32>
    tpu.vector_store %arg7[%c0_52, %c15_53, %c256_54], %70 {strides = array<i32>} : memref<2x16x384xf32, #tpu.memory_space<vmem>>, vector<2x1x128xf32>,
    %c0_55 = arith.constant 0 : index
    %c0_56 = arith.constant 0 : index
    %c0_57 = arith.constant 0 : index
    %72 = vector.load %arg7[%c0_55, %c0_56, %c0_57] : memref<2x16x384xf32, #tpu.memory_space<vmem>>, vector<2x16x384xf32>
    %73 = vector.shape_cast %72 : vector<2x16x384xf32> to vector<32x384xf32>
    %74 = arith.truncf %73 : vector<32x384xf32> to vector<32x384xbf16>
    %c0_58 = arith.constant 0 : index
    %c0_59 = arith.constant 0 : index
    %75 = vector.load %arg2[%c0_58, %c0_59] : memref<384x128xbf16, #tpu.memory_space<vmem>>, vector<384x128xbf16>
    %cst_60 = arith.constant dense<0.000000e+00> : vector<32x128xf32>
    %76 = tpu.matmul %74, %75, %cst_60 {dimension_numbers = #tpu.dot_dimension_numbers<[1], [0], [0], [1], [0, 0, 1, 1], [], []>} : vector<32x384xbf16>, vector<384x128xbf16>, vector<32x128xf32> -> vector<32x128xf32>
    %77 = vector.broadcast %3 : vector<1x128xf32> to vector<32x128xf32>
    %78 = arith.addf %76, %77 : vector<32x128xf32>
    %cst_61 = arith.constant dense<0.000000e+00> : vector<128xf32>
    %79 = vector.multi_reduction <add>, %78, %cst_61 [0] : vector<32x128xf32> to vector<128xf32>
    %80 = vector.shape_cast %79 : vector<128xf32> to vector<1x128xf32>
    %c8_i32_62 = arith.constant 8 : i32
    %81 = tpu.dynamic_rotate %80 by %c8_i32_62 dim 1 : vector<1x128xf32>, i32 -> vector<1x128xf32>
    %82 = arith.addf %80, %81 : vector<1x128xf32>
    %c16_i32_63 = arith.constant 16 : i32
    %83 = tpu.dynamic_rotate %82 by %c16_i32_63 dim 1 : vector<1x128xf32>, i32 -> vector<1x128xf32>
    %84 = arith.addf %82, %83 : vector<1x128xf32>
    %c32_i32_64 = arith.constant 32 : i32
    %85 = tpu.dynamic_rotate %84 by %c32_i32_64 dim 1 : vector<1x128xf32>, i32 -> vector<1x128xf32>
    %86 = arith.addf %84, %85 : vector<1x128xf32>
    %c64_i32_65 = arith.constant 64 : i32
    %87 = tpu.dynamic_rotate %86 by %c64_i32_65 dim 1 : vector<1x128xf32>, i32 -> vector<1x128xf32>
    %88 = arith.addf %86, %87 : vector<1x128xf32>
    %cst_66 = arith.constant 0.001953125 : f32
    %89 = vector.broadcast %cst_66 : f32 to vector<1x128xf32>
    %90 = arith.mulf %88, %89 : vector<1x128xf32>
    %91 = vector.broadcast %90 : vector<1x128xf32> to vector<32x128xf32>
    %92 = arith.subf %78, %91 : vector<32x128xf32>
    %93 = arith.mulf %92, %92 : vector<32x128xf32>
    %cst_67 = arith.constant dense<0.000000e+00> : vector<128xf32>
    %94 = vector.multi_reduction <add>, %93, %cst_67 [0] : vector<32x128xf32> to vector<128xf32>
    %95 = vector.shape_cast %94 : vector<128xf32> to vector<1x128xf32>
    %c8_i32_68 = arith.constant 8 : i32
    %96 = tpu.dynamic_rotate %95 by %c8_i32_68 dim 1 : vector<1x128xf32>, i32 -> vector<1x128xf32>
    %97 = arith.addf %95, %96 : vector<1x128xf32>
    %c16_i32_69 = arith.constant 16 : i32
    %98 = tpu.dynamic_rotate %97 by %c16_i32_69 dim 1 : vector<1x128xf32>, i32 -> vector<1x128xf32>
    %99 = arith.addf %97, %98 : vector<1x128xf32>
    %c32_i32_70 = arith.constant 32 : i32
    %100 = tpu.dynamic_rotate %99 by %c32_i32_70 dim 1 : vector<1x128xf32>, i32 -> vector<1x128xf32>
    %101 = arith.addf %99, %100 : vector<1x128xf32>
    %c64_i32_71 = arith.constant 64 : i32
    %102 = tpu.dynamic_rotate %101 by %c64_i32_71 dim 1 : vector<1x128xf32>, i32 -> vector<1x128xf32>
    %103 = arith.addf %101, %102 : vector<1x128xf32>
    %cst_72 = arith.constant 0.001953125 : f32
    %104 = vector.broadcast %cst_72 : f32 to vector<1x128xf32>
    %105 = arith.mulf %103, %104 : vector<1x128xf32>
    %cst_73 = arith.constant 9.99999974E-6 : f32
    %106 = vector.broadcast %cst_73 : f32 to vector<1x128xf32>
    %107 = arith.addf %105, %106 : vector<1x128xf32>
    %108 = math.rsqrt %107 : vector<1x128xf32>
    %109 = vector.broadcast %108 : vector<1x128xf32> to vector<32x128xf32>
    %110 = arith.mulf %92, %109 : vector<32x128xf32>
    %111 = vector.broadcast %4 : vector<1x128xf32> to vector<32x128xf32>
    %112 = arith.mulf %110, %111 : vector<32x128xf32>
    %113 = vector.broadcast %5 : vector<1x128xf32> to vector<32x128xf32>
    %114 = arith.addf %112, %113 : vector<32x128xf32>
    %115 = vector.shape_cast %7 : vector<2x16x64xf32> to vector<32x64xf32>
    %116 = arith.truncf %115 : vector<32x64xf32> to vector<32x64xbf16>
    %c0_74 = arith.constant 0 : index
    %c0_75 = arith.constant 0 : index
    %117 = vector.load %arg3[%c0_74, %c0_75] : memref<64x128xbf16, #tpu.memory_space<vmem>>, vector<64x128xbf16>
    %cst_76 = arith.constant dense<0.000000e+00> : vector<32x128xf32>
    %118 = tpu.matmul %116, %117, %cst_76 {dimension_numbers = #tpu.dot_dimension_numbers<[1], [0], [0], [1], [0, 0, 1, 1], [], []>} : vector<32x64xbf16>, vector<64x128xbf16>, vector<32x128xf32> -> vector<32x128xf32>
    %119 = vector.broadcast %6 : vector<1x128xf32> to vector<32x128xf32>
    %120 = arith.addf %118, %119 : vector<32x128xf32>
    %121 = arith.addf %114, %120 : vector<32x128xf32>
    %cst_77 = arith.constant 0.000000e+00 : f32
    %122 = vector.broadcast %cst_77 : f32 to vector<32x128xf32>
    %123 = arith.maximumf %121, %122 : vector<32x128xf32>
    %c0_78 = arith.constant 0 : index
    %c0_79 = arith.constant 0 : index
    %124 = vector.load %arg5[%c0_78, %c0_79] : memref<32x128xf32, #tpu.memory_space<vmem>>, vector<32x128xf32>
    tpu.vector_store %arg5[%c0_78, %c0_79], %123 {strides = array<i32>} : memref<32x128xf32, #tpu.memory_space<vmem>>, vector<32x128xf32>,
    return
  }
}

</mosaic_0001>

<llo_original>
// kernel: tpu_custom_call.1
$region0: #{tpu_custom_call.1}
  #allocation0 [shape = 'u32[]', space=smem, size = 0x4, offset = 0x4, fixed_abs, tag = 'smem constant byte address 0x4 - core index']
  #allocation1 [shape = 'u32[144,128]{1,0:T(1,128)}', space=vmem, size = 0x12000, scoped, tag = 'internal scratch']
  #allocation2 [shape = 'f32[2,16,192]{2,1,0:T(8,128)}', space=vmem, size = 0x8000, scoped, tag = 'scratch operand']
  #allocation3 [shape = 'f32[2,16,384]{2,1,0:T(8,128)}', space=vmem, size = 0xc000, scoped, tag = 'scratch operand']
  %s0 = inlined_call_operand.hbm [shape: f32[2,16,64], index: 0, kind: input, shape index: {}]
  %s1 = inlined_call_operand.hbm [shape: bf16[192,128], index: 1, kind: input, shape index: {}]
  %s2 = inlined_call_operand.hbm [shape: bf16[384,128], index: 2, kind: input, shape index: {}]
  %s3 = inlined_call_operand.hbm [shape: bf16[64,128], index: 3, kind: input, shape index: {}]
  %s4 = inlined_call_operand.hbm [shape: f32[8,128], index: 4, kind: input, shape index: {}]
  %s5 = inlined_call_operand.hbm [shape: f32[32,128], index: 5, kind: output, shape index: {}]
  %s6 = sld [smem:[#allocation0]]
  $region50: #{tpu_custom_call.1} parent=0
    _
  %s8 = ssub.s32 1, %s6
  %s9 = scalar_select 0, %s8, %s6
  $region1: #{tpu_custom_call.1} parent=0
    #allocation4 [shape = 'u8[16384]{0}', space=vmem, size = 0x4000, scoped, tag = 'input window, operand 0, single buffered']
    #allocation5 [shape = 's32[1]{0}', space=sflag, size = 0x4, scoped, tag = 'scoped memory for tpu_custom_call.1']
    #allocation6 [shape = 's32[1]{0}', space=sflag, size = 0x4, scoped, tag = 'scoped memory for tpu_custom_call.1']
    #allocation7 [shape = 'u8[49152]{0}', space=vmem, size = 0xc000, scoped, tag = 'input window, operand 1, single buffered']
    #allocation8 [shape = 's32[1]{0}', space=sflag, size = 0x4, scoped, tag = 'scoped memory for tpu_custom_call.1']
    #allocation9 [shape = 'u8[98304]{0}', space=vmem, size = 0x18000, scoped, tag = 'input window, operand 2, single buffered']
    #allocation10 [shape = 'u8[16384]{0}', space=vmem, size = 0x4000, scoped, tag = 'input window, operand 3, single buffered']
    #allocation11 [shape = 's32[1]{0}', space=sflag, size = 0x4, scoped, tag = 'scoped memory for tpu_custom_call.1']
    #allocation12 [shape = 'u8[4096]{0}', space=vmem, size = 0x1000, scoped, tag = 'input window, operand 4, single buffered']
    #allocation13 [shape = 'u8[16384]{0}', space=vmem, size = 0x4000, scoped, tag = 'output window, operand 0, single buffered']
    %10 = vsyncpa [#allocation5], 0
    %11 = vsyncpa [#allocation8], 0
    %12 = vsyncpa [#allocation11], 0
    %13 = vsyncpa [#allocation6], 0
    // Predicated region
    $region2: #{tpu_custom_call.1} parent=1 // pred_check
      _
    $region3: #{tpu_custom_call.1} parent=1 // pred_check_branch
      %15 = sbr.rel (0) target = $region5
    $region4: #{tpu_custom_call.1} parent=1 // pred_region
      %s17 = ssub.s32 512, 512
      %18 = vsyncadd [#allocation5], %s17
      %s19 = sshll.u32 [#allocation4], 4
      %s20 = int_to_ptr.vmem [resolvable:$true] %s19
      %25 = dma.hbm_to_vmem [thread:$0]  %s0, 512, %s20, [#allocation5], 128, 128, 8
    $region5: #{tpu_custom_call.1} parent=1 // pred_fallthru
      _
    // Predicated region
    $region6: #{tpu_custom_call.1} parent=1 // pred_check
      _
    $region7: #{tpu_custom_call.1} parent=1 // pred_check_branch
      %27 = sbr.rel (0) target = $region9
    $region8: #{tpu_custom_call.1} parent=1 // pred_region
      %s29 = ssub.s32 1536, 1536
      %30 = vsyncadd [#allocation8], %s29
      %s31 = sshll.u32 [#allocation7], 4
      %s32 = int_to_ptr.vmem [resolvable:$true] %s31
      %37 = dma.hbm_to_vmem [thread:$0]  %s1, 1536, %s32, [#allocation8], 64, 64, 4
    $region9: #{tpu_custom_call.1} parent=1 // pred_fallthru
      _
    // Predicated region
    $region10: #{tpu_custom_call.1} parent=1 // pred_check
      _
    $region11: #{tpu_custom_call.1} parent=1 // pred_check_branch
      %39 = sbr.rel (0) target = $region13
    $region12: #{tpu_custom_call.1} parent=1 // pred_region
      %s41 = ssub.s32 3072, 3072
      %42 = vsyncadd [#allocation8], %s41
      %s43 = sshll.u32 [#allocation9], 4
      %s44 = int_to_ptr.vmem [resolvable:$true] %s43
      %49 = dma.hbm_to_vmem [thread:$0]  %s2, 3072, %s44, [#allocation8], 64, 64, 4
    $region13: #{tpu_custom_call.1} parent=1 // pred_fallthru
      _
    // Predicated region
    $region14: #{tpu_custom_call.1} parent=1 // pred_check
      _
    $region15: #{tpu_custom_call.1} parent=1 // pred_check_branch
      %51 = sbr.rel (0) target = $region17
    $region16: #{tpu_custom_call.1} parent=1 // pred_region
      %s53 = ssub.s32 512, 512
      %54 = vsyncadd [#allocation11], %s53
      %s55 = sshll.u32 [#allocation10], 4
      %s56 = int_to_ptr.vmem [resolvable:$true] %s55
      %61 = dma.hbm_to_vmem [thread:$0]  %s3, 512, %s56, [#allocation11], 64, 64, 4
    $region17: #{tpu_custom_call.1} parent=1 // pred_fallthru
      _
    // Predicated region
    $region18: #{tpu_custom_call.1} parent=1 // pred_check
      _
    $region19: #{tpu_custom_call.1} parent=1 // pred_check_branch
      %63 = sbr.rel (0) target = $region21
    $region20: #{tpu_custom_call.1} parent=1 // pred_region
      %s65 = ssub.s32 128, 128
      %66 = vsyncadd [#allocation11], %s65
      %s68 = sshll.u32 [#allocation12], 4
      %s69 = int_to_ptr.vmem [resolvable:$true] %s68
      %71 = dma.hbm_to_vmem [thread:$0]  %s4, 128, %s69, [#allocation11]
    $region21: #{tpu_custom_call.1} parent=1 // pred_fallthru
      _
    // Predicated region
    $region22: #{tpu_custom_call.1} parent=1 // pred_check
      _
    $region23: #{tpu_custom_call.1} parent=1 // pred_check_branch
      %73 = sbr.rel (0) target = $region25
    $region24: #{tpu_custom_call.1} parent=1 // pred_region
      %74 = dma.done [#allocation5], 512
    $region25: #{tpu_custom_call.1} parent=1 // pred_fallthru
      _
    // Predicated region
    $region26: #{tpu_custom_call.1} parent=1 // pred_check
      _
    $region27: #{tpu_custom_call.1} parent=1 // pred_check_branch
      %76 = sbr.rel (0) target = $region29
    $region28: #{tpu_custom_call.1} parent=1 // pred_region
      %77 = dma.done [#allocation8], 1536
    $region29: #{tpu_custom_call.1} parent=1 // pred_fallthru
      _
    // Predicated region
    $region30: #{tpu_custom_call.1} parent=1 // pred_check
      _
    $region31: #{tpu_custom_call.1} parent=1 // pred_check_branch
      %79 = sbr.rel (0) target = $region33
    $region32: #{tpu_custom_call.1} parent=1 // pred_region
      %80 = dma.done [#allocation8], 3072
    $region33: #{tpu_custom_call.1} parent=1 // pred_fallthru
      _
    // Predicated region
    $region34: #{tpu_custom_call.1} parent=1 // pred_check
      _
    $region35: #{tpu_custom_call.1} parent=1 // pred_check_branch
      %82 = sbr.rel (0) target = $region37
    $region36: #{tpu_custom_call.1} parent=1 // pred_region
      %83 = dma.done [#allocation11], 512
    $region37: #{tpu_custom_call.1} parent=1 // pred_fallthru
      _
    // Predicated region
    $region38: #{tpu_custom_call.1} parent=1 // pred_check
      _
    $region39: #{tpu_custom_call.1} parent=1 // pred_check_branch
      %85 = sbr.rel (0) target = $region41
    $region40: #{tpu_custom_call.1} parent=1 // pred_region
      %86 = dma.done [#allocation11], 128
    $region41: #{tpu_custom_call.1} parent=1 // pred_fallthru
      _
    %v88 = vld [vmem:[#allocation12] sm:$0x1]
    %v89 = vld [vmem:[#allocation12 + $0x1] sm:$0x1]
    %v90 = vld [vmem:[#allocation12 + $0x2] sm:$0x1]
    %v91 = vld [vmem:[#allocation12 + $0x3] sm:$0x1]
    %v92 = vld [vmem:[#allocation12 + $0x4] sm:$0x1]
    %v93 = vld [vmem:[#allocation12 + $0x5] sm:$0x1]
    %v94 = vld [vmem:[#allocation12 + $0x6] sm:$0x1]
    %v95 = vld [vmem:[#allocation4] sm:$0xff]
    %v96 = vld [vmem:[#allocation4 + $0x8] sm:$0xff]
    %v97 = vld [vmem:[#allocation4 + $0x10] sm:$0xff]
    %v98 = vld [vmem:[#allocation4 + $0x18] sm:$0xff]
    %vm99 = vcmask 516096
    %100 = vst.msk [vmem:[#allocation2] sm:$0x1] %vm99, 0.0
    %101 = vst.msk [vmem:[#allocation2 + $0x20] sm:$0x1] %vm99, 0.0
    %vm106 = vcmask 1040384
    %v107 = vrot.slane %v95, 7
    %v108 = vrot.slane %v96, 7
    %v109 = vsel %vm106, %v107, %v108
    %v110 = vrot.slane %v97, 7
    %v111 = vrot.slane %v98, 7
    %v112 = vsel %vm106, %v110, %v111
    %vm117 = vcmask 523265
    %118 = vst.msk [vmem:[#allocation2] sm:$0xfe] %vm117, %v107
    %vm119 = vcmask 523264
    %120 = vst.msk [vmem:[#allocation2 + $0x10] sm:$0xff] %vm119, %v109
    %121 = vst.msk [vmem:[#allocation2 + $0x20] sm:$0xfe] %vm117, %v110
    %122 = vst.msk [vmem:[#allocation2 + $0x30] sm:$0xff] %vm119, %v112
    %123 = vrot.lane.b32.xlu0 %v95, 64
    %v124 = vpop.permute.xlu0 %123
    %125 = vrot.lane.b32.xlu0 %v96, 64
    %v126 = vpop.permute.xlu0 %125
    %127 = vrot.lane.b32.xlu0 %v97, 64
    %v128 = vpop.permute.xlu0 %127
    %129 = vrot.lane.b32.xlu0 %v98, 64
    %v130 = vpop.permute.xlu0 %129
    %vm135 = vcmask 1048064
    %136 = vst.msk [vmem:[#allocation2] sm:$0xff] %vm135, %v124
    %137 = vst.msk [vmem:[#allocation2 + $0x10] sm:$0xff] %vm135, %v126
    %138 = vst.msk [vmem:[#allocation2 + $0x20] sm:$0xff] %vm135, %v128
    %139 = vst.msk [vmem:[#allocation2 + $0x30] sm:$0xff] %vm135, %v130
    %vm140 = vcmask 1046528
    %v141 = vrot.slane %v95, 1
    %v142 = vrot.slane %v96, 1
    %v143 = vsel %vm140, %v141, %v142
    %v144 = vrot.slane %v97, 1
    %v145 = vrot.slane %v98, 1
    %v146 = vsel %vm140, %v144, %v145
    %151 = vst.msk [vmem:[#allocation2 + $0x8] sm:$0xff] %vm119, %v143
    %vm152 = vcmask 522240
    %153 = vst.msk [vmem:[#allocation2 + $0x18] sm:$0x7f] %vm152, %v142
    %154 = vst.msk [vmem:[#allocation2 + $0x28] sm:$0xff] %vm119, %v146
    %155 = vst.msk [vmem:[#allocation2 + $0x38] sm:$0x7f] %vm152, %v145
    %156 = vst.msk [vmem:[#allocation2 + $0x1f] sm:$0x1] %vm99, 0.0
    %157 = vst.msk [vmem:[#allocation2 + $0x3f] sm:$0x1] %vm99, 0.0
    %v158 = vld [vmem:[#allocation2] sm:$0xff]
    %v159 = vld [vmem:[#allocation2 + $0x8] sm:$0xff]
    %v160 = vld [vmem:[#allocation2 + $0x10] sm:$0xff]
    %v161 = vld [vmem:[#allocation2 + $0x18] sm:$0xff]
    %v162 = vld [vmem:[#allocation2 + $0x20] sm:$0xff]
    %v163 = vld [vmem:[#allocation2 + $0x28] sm:$0xff]
    %v164 = vld [vmem:[#allocation2 + $0x30] sm:$0xff]
    %v165 = vld [vmem:[#allocation2 + $0x38] sm:$0xff]
    %v166 = vpack.c.bf16 %v160, %v158
    %v167 = vpack.c.bf16 %v161, %v159
    %v168 = vpack.c.bf16 %v164, %v162
    %v169 = vpack.c.bf16 %v165, %v163
    %v170 = vld [vmem:[#allocation7] sm:$0xf]
    %v171 = vld [vmem:[#allocation7 + $0x4] sm:$0xf]
    %v172 = vld [vmem:[#allocation7 + $0x8] sm:$0xf]
    %v173 = vld [vmem:[#allocation7 + $0xc] sm:$0xf]
    %v174 = vld [vmem:[#allocation7 + $0x10] sm:$0xf]
    %v175 = vld [vmem:[#allocation7 + $0x14] sm:$0xf]
    %v176 = vld [vmem:[#allocation7 + $0x18] sm:$0xf]
    %v177 = vld [vmem:[#allocation7 + $0x1c] sm:$0xf]
    %v178 = vld [vmem:[#allocation7 + $0x20] sm:$0xf]
    %v179 = vld [vmem:[#allocation7 + $0x24] sm:$0xf]
    %v180 = vld [vmem:[#allocation7 + $0x28] sm:$0xf]
    %v181 = vld [vmem:[#allocation7 + $0x2c] sm:$0xf]
    %v182 = vld [vmem:[#allocation7 + $0x30] sm:$0xf]
    %v183 = vld [vmem:[#allocation7 + $0x34] sm:$0xf]
    %v184 = vld [vmem:[#allocation7 + $0x38] sm:$0xf]
    %v185 = vld [vmem:[#allocation7 + $0x3c] sm:$0xf]
    %v186 = vld [vmem:[#allocation7 + $0x40] sm:$0xf]
    %v187 = vld [vmem:[#allocation7 + $0x44] sm:$0xf]
    %v188 = vld [vmem:[#allocation7 + $0x48] sm:$0xf]
    %v189 = vld [vmem:[#allocation7 + $0x4c] sm:$0xf]
    %v190 = vld [vmem:[#allocation7 + $0x50] sm:$0xf]
    %v191 = vld [vmem:[#allocation7 + $0x54] sm:$0xf]
    %v192 = vld [vmem:[#allocation7 + $0x58] sm:$0xf]
    %v193 = vld [vmem:[#allocation7 + $0x5c] sm:$0xf]
    %v194 = vlaneseq
    %v195 = vshrl.u32 %v194, 7
    %v196 = vsub.s32 0, %v195
    %v197 = vrot.slane %v88, %v196
    %v222 = vunpack.c.l.b16 %v170
    %v223 = vunpack.c.l.b16 %v171
    %v224 = vunpack.c.l.b16 %v172
    %v225 = vunpack.c.l.b16 %v173
    %v226 = vunpack.c.l.b16 %v174
    %v227 = vunpack.c.l.b16 %v175
    %v228 = vunpack.c.l.b16 %v176
    %v229 = vunpack.c.l.b16 %v177
    %v230 = vunpack.c.l.b16 %v178
    %v231 = vunpack.c.l.b16 %v179
    %v232 = vunpack.c.l.b16 %v180
    %v233 = vunpack.c.l.b16 %v181
    %v234 = vunpack.c.l.b16 %v182
    %v235 = vunpack.c.l.b16 %v183
    %v236 = vunpack.c.l.b16 %v184
    %v237 = vunpack.c.l.b16 %v185
    %v238 = vunpack.c.l.b16 %v186
    %v239 = vunpack.c.l.b16 %v187
    %v240 = vunpack.c.l.b16 %v188
    %v241 = vunpack.c.l.b16 %v189
    %v242 = vunpack.c.l.b16 %v190
    %v243 = vunpack.c.l.b16 %v191
    %v244 = vunpack.c.l.b16 %v192
    %v245 = vunpack.c.l.b16 %v193
    %v246 = vpack.c.b16 %v223, %v222
    %v247 = vpack.c.b16 %v225, %v224
    %v248 = vpack.c.b16 %v227, %v226
    %v249 = vpack.c.b16 %v229, %v228
    %v250 = vpack.c.b16 %v231, %v230
    %v251 = vpack.c.b16 %v233, %v232
    %v252 = vpack.c.b16 %v235, %v234
    %v253 = vpack.c.b16 %v237, %v236
    %v254 = vpack.c.b16 %v239, %v238
    %v255 = vpack.c.b16 %v241, %v240
    %v256 = vpack.c.b16 %v243, %v242
    %v257 = vpack.c.b16 %v245, %v244
    %v271 = vsel %vm119, %v167, 0
    %v274 = vsel %vm119, %v169, 0
    %276 = vmatprep.subr.bf16.mxu0 0
    %277 = vmatpush1.bf16.msra.mxu0 %v253
    %278 = vmatprep.subr.bf16.mxu0 0
    %279 = vmatpush1.bf16.msra.mxu0 %v252
    %280 = vmatprep.subr.bf16.mxu0 0
    %281 = vmatpush1.bf16.msra.mxu0 %v251
    %282 = vmatprep.subr.bf16.mxu0 0
    %283 = vmatpush1.bf16.msra.mxu0 %v250
    %284 = vmatprep.subr.bf16.mxu0 0
    %285 = vmatpush1.bf16.msra.mxu0 %v249
    %286 = vmatprep.subr.bf16.mxu0 0
    %287 = vmatpush1.bf16.msra.mxu0 %v248
    %288 = vmatprep.subr.bf16.mxu0 0
    %289 = vmatpush1.bf16.msra.mxu0 %v247
    %290 = vmatprep.subr.bf16.mxu0 0
    %291 = vmatpush1.bf16.msra.mxu0 %v246
    %292 = vmatprep.subr.bf16.mxu0 0
    %293 = vmatpush2.bf16.msra.mxu0 0
    %294 = vmatprep.subr.bf16.mxu0 0
    %295 = vmatpush2.bf16.msra.mxu0 0
    %296 = vmatprep.subr.bf16.mxu0 0
    %297 = vmatpush2.bf16.msra.mxu0 0
    %298 = vmatprep.subr.bf16.mxu0 0
    %299 = vmatpush2.bf16.msra.mxu0 0
    %300 = vmatprep.subr.bf16.mxu0 0
    %301 = vmatpush2.bf16.msra.mxu0 %v257
    %302 = vmatprep.subr.bf16.mxu0 0
    %303 = vmatpush2.bf16.msra.mxu0 %v256
    %304 = vmatprep.subr.bf16.mxu0 0
    %305 = vmatpush2.bf16.msra.mxu0 %v255
    %306 = vmatprep.subr.bf16.mxu0 0
    %307 = vmatpush2.bf16.msra.mxu0 %v254
    %308 = vmatprep.mubr.bf16.mxu0 %v271
    %309 = vmatmul.mubr.bf16.gmra.mxu0 %v166
    %v310 = vpop.f32.mrf.mxu0
    %v311 = vadd.f32 %v197, %v310
    %v312 = vpop.f32.mrf.mxu0
    %v313 = vpop.f32.mrf.mxu0
    %v314 = vadd.f32 %v197, %v313
    %v315 = vpop.f32.mrf.mxu0
    %316 = vmatprep.mubr.bf16.mxu0 %v274
    %317 = vmatmul.mubr.bf16.gmra.mxu0 %v168
    %v318 = vpop.f32.mrf.mxu0
    %v319 = vadd.f32 %v197, %v318
    %v320 = vpop.f32.mrf.mxu0
    %v321 = vpop.f32.mrf.mxu0
    %v322 = vadd.f32 %v197, %v321
    %v323 = vpop.f32.mrf.mxu0
    %324 = vdwg.mxu0
    %v325 = vadd.f32 %v311, %v314
    %v326 = vadd.f32 %v325, %v319
    %v327 = vadd.f32 %v326, %v322
    %v328 = vrot.slane %v327, 4
    %v329 = vadd.f32 %v327, %v328
    %v330 = vrot.slane %v329, 2
    %v331 = vadd.f32 %v329, %v330
    %v332 = vrot.slane %v331, 1
    %v333 = vadd.f32 %v331, %v332
    %334 = vrot.lane.b32.xlu0 %v333, 8
    %v335 = vpop.permute.xlu0 %334
    %v336 = vadd.f32 %v333, %v335
    %337 = vrot.lane.b32.xlu0 %v336, 16
    %v338 = vpop.permute.xlu0 %337
    %v339 = vadd.f32 %v336, %v338
    %340 = vrot.lane.b32.xlu0 %v339, 32
    %v341 = vpop.permute.xlu0 %340
    %v342 = vadd.f32 %v339, %v341
    %343 = vrot.lane.b32.xlu0 %v342, 64
    %v344 = vpop.permute.xlu0 %343
    %v345 = vadd.f32 %v342, %v344
    %v346 = vmul.f32 %v345, 0.001953125
    %v347 = vlaneseq
    %v348 = vshrl.u32 %v347, 7
    %v349 = vsub.s32 0, %v348
    %v350 = vrot.slane %v346, %v349
    %v351 = vsub.f32 %v311, %v350
    %v352 = vsub.f32 %v314, %v350
    %v353 = vsub.f32 %v319, %v350
    %v354 = vsub.f32 %v322, %v350
    %v355 = vmul.f32 %v351, %v351
    %v356 = vmul.f32 %v352, %v352
    %v357 = vmul.f32 %v353, %v353
    %v358 = vmul.f32 %v354, %v354
    %v359 = vadd.f32 %v355, %v356
    %v360 = vadd.f32 %v359, %v357
    %v361 = vadd.f32 %v360, %v358
    %v362 = vrot.slane %v361, 4
    %v363 = vadd.f32 %v361, %v362
    %v364 = vrot.slane %v363, 2
    %v365 = vadd.f32 %v363, %v364
    %v366 = vrot.slane %v365, 1
    %v367 = vadd.f32 %v365, %v366
    %368 = vrot.lane.b32.xlu0 %v367, 8
    %v369 = vpop.permute.xlu0 %368
    %v370 = vadd.f32 %v367, %v369
    %371 = vrot.lane.b32.xlu0 %v370, 16
    %v372 = vpop.permute.xlu0 %371
    %v373 = vadd.f32 %v370, %v372
    %374 = vrot.lane.b32.xlu0 %v373, 32
    %v375 = vpop.permute.xlu0 %374
    %v376 = vadd.f32 %v373, %v375
    %377 = vrot.lane.b32.xlu0 %v376, 64
    %v378 = vpop.permute.xlu0 %377
    %v379 = vadd.f32 %v376, %v378
    %v380 = vmul.f32 %v379, 0.001953125
    %v381 = vadd.f32 %v380, 1e-05
    %v382 = vrsqrt.pop %v381
    %v383 = vlaneseq
    %v384 = vshrl.u32 %v383, 7
    %v385 = vsub.s32 0, %v384
    %v386 = vrot.slane %v382, %v385
    %v387 = vmul.f32 %v351, %v386
    %v388 = vmul.f32 %v352, %v386
    %v389 = vmul.f32 %v353, %v386
    %v390 = vmul.f32 %v354, %v386
    %v391 = vlaneseq
    %v392 = vshrl.u32 %v391, 7
    %v393 = vsub.s32 0, %v392
    %v394 = vrot.slane %v89, %v393
    %v395 = vmul.f32 %v387, %v394
    %v396 = vmul.f32 %v388, %v394
    %v397 = vmul.f32 %v389, %v394
    %v398 = vmul.f32 %v390, %v394
    %v399 = vlaneseq
    %v400 = vshrl.u32 %v399, 7
    %v401 = vsub.s32 0, %v400
    %v402 = vrot.slane %v90, %v401
    %v403 = vadd.f32 %v395, %v402
    %v404 = vadd.f32 %v396, %v402
    %v405 = vadd.f32 %v397, %v402
    %v406 = vadd.f32 %v398, %v402
    %v407 = vmax.f32 %v403, 0.0
    %v408 = vmax.f32 %v404, 0.0
    %v409 = vmax.f32 %v405, 0.0
    %v410 = vmax.f32 %v406, 0.0
    %411 = vst [vmem:[#allocation3] sm:$0x1] 0.0
    %412 = vst [vmem:[#allocation3 + $0x30] sm:$0x1] 0.0
    %v417 = vrot.slane %v407, 7
    %v418 = vrot.slane %v408, 7
    %v419 = vsel %vm106, %v417, %v418
    %v420 = vrot.slane %v409, 7
    %v421 = vrot.slane %v410, 7
    %v422 = vsel %vm106, %v420, %v421
    %427 = vst [vmem:[#allocation3] sm:$0xfe] %v417
    %428 = vst [vmem:[#allocation3 + $0x18] sm:$0xff] %v419
    %429 = vst [vmem:[#allocation3 + $0x30] sm:$0xfe] %v420
    %430 = vst [vmem:[#allocation3 + $0x48] sm:$0xff] %v422
    %431 = vst [vmem:[#allocation3 + $0x8] sm:$0xff] %v407
    %432 = vst [vmem:[#allocation3 + $0x20] sm:$0xff] %v408
    %433 = vst [vmem:[#allocation3 + $0x38] sm:$0xff] %v409
    %434 = vst [vmem:[#allocation3 + $0x50] sm:$0xff] %v410
    %v435 = vrot.slane %v407, 1
    %v436 = vrot.slane %v408, 1
    %v437 = vsel %vm140, %v435, %v436
    %v438 = vrot.slane %v409, 1
    %v439 = vrot.slane %v410, 1
    %v440 = vsel %vm140, %v438, %v439
    %445 = vst [vmem:[#allocation3 + $0x10] sm:$0xff] %v437
    %446 = vst [vmem:[#allocation3 + $0x28] sm:$0x7f] %v436
    %447 = vst [vmem:[#allocation3 + $0x40] sm:$0xff] %v440
    %448 = vst [vmem:[#allocation3 + $0x58] sm:$0x7f] %v439
    %449 = vst [vmem:[#allocation3 + $0x2f] sm:$0x1] 0.0
    %450 = vst [vmem:[#allocation3 + $0x5f] sm:$0x1] 0.0
    %v451 = vld [vmem:[#allocation3] sm:$0xff]
    %v452 = vld [vmem:[#allocation3 + $0x8] sm:$0xff]
    %v453 = vld [vmem:[#allocation3 + $0x10] sm:$0xff]
    %v454 = vld [vmem:[#allocation3 + $0x18] sm:$0xff]
    %v455 = vld [vmem:[#allocation3 + $0x20] sm:$0xff]
    %v456 = vld [vmem:[#allocation3 + $0x28] sm:$0xff]
    %v457 = vld [vmem:[#allocation3 + $0x30] sm:$0xff]
    %v458 = vld [vmem:[#allocation3 + $0x38] sm:$0xff]
    %v459 = vld [vmem:[#allocation3 + $0x40] sm:$0xff]
    %v460 = vld [vmem:[#allocation3 + $0x48] sm:$0xff]
    %v461 = vld [vmem:[#allocation3 + $0x50] sm:$0xff]
    %v462 = vld [vmem:[#allocation3 + $0x58] sm:$0xff]
    %v463 = vpack.c.bf16 %v454, %v451
    %v464 = vpack.c.bf16 %v455, %v452
    %v465 = vpack.c.bf16 %v456, %v453
    %v466 = vpack.c.bf16 %v460, %v457
    %v467 = vpack.c.bf16 %v461, %v458
    %v468 = vpack.c.bf16 %v462, %v459
    %v469 = vld [vmem:[#allocation9] sm:$0xf]
    %v470 = vld [vmem:[#allocation9 + $0x4] sm:$0xf]
    %v471 = vld [vmem:[#allocation9 + $0x8] sm:$0xf]
    %v472 = vld [vmem:[#allocation9 + $0xc] sm:$0xf]
    %v473 = vld [vmem:[#allocation9 + $0x10] sm:$0xf]
    %v474 = vld [vmem:[#allocation9 + $0x14] sm:$0xf]
    %v475 = vld [vmem:[#allocation9 + $0x18] sm:$0xf]
    %v476 = vld [vmem:[#allocation9 + $0x1c] sm:$0xf]
    %v477 = vld [vmem:[#allocation9 + $0x20] sm:$0xf]
    %v478 = vld [vmem:[#allocation9 + $0x24] sm:$0xf]
    %v479 = vld [vmem:[#allocation9 + $0x28] sm:$0xf]
    %v480 = vld [vmem:[#allocation9 + $0x2c] sm:$0xf]
    %v481 = vld [vmem:[#allocation9 + $0x30] sm:$0xf]
    %v482 = vld [vmem:[#allocation9 + $0x34] sm:$0xf]
    %v483 = vld [vmem:[#allocation9 + $0x38] sm:$0xf]
    %v484 = vld [vmem:[#allocation9 + $0x3c] sm:$0xf]
    %v485 = vld [vmem:[#allocation9 + $0x40] sm:$0xf]
    %v486 = vld [vmem:[#allocation9 + $0x44] sm:$0xf]
    %v487 = vld [vmem:[#allocation9 + $0x48] sm:$0xf]
    %v488 = vld [vmem:[#allocation9 + $0x4c] sm:$0xf]
    %v489 = vld [vmem:[#allocation9 + $0x50] sm:$0xf]
    %v490 = vld [vmem:[#allocation9 + $0x54] sm:$0xf]
    %v491 = vld [vmem:[#allocation9 + $0x58] sm:$0xf]
    %v492 = vld [vmem:[#allocation9 + $0x5c] sm:$0xf]
    %v493 = vld [vmem:[#allocation9 + $0x60] sm:$0xf]
    %v494 = vld [vmem:[#allocation9 + $0x64] sm:$0xf]
    %v495 = vld [vmem:[#allocation9 + $0x68] sm:$0xf]
    %v496 = vld [vmem:[#allocation9 + $0x6c] sm:$0xf]
    %v497 = vld [vmem:[#allocation9 + $0x70] sm:$0xf]
    %v498 = vld [vmem:[#allocation9 + $0x74] sm:$0xf]
    %v499 = vld [vmem:[#allocation9 + $0x78] sm:$0xf]
    %v500 = vld [vmem:[#allocation9 + $0x7c] sm:$0xf]
    %v501 = vld [vmem:[#allocation9 + $0x80] sm:$0xf]
    %v502 = vld [vmem:[#allocation9 + $0x84] sm:$0xf]
    %v503 = vld [vmem:[#allocation9 + $0x88] sm:$0xf]
    %v504 = vld [vmem:[#allocation9 + $0x8c] sm:$0xf]
    %v505 = vld [vmem:[#allocation9 + $0x90] sm:$0xf]
    %v506 = vld [vmem:[#allocation9 + $0x94] sm:$0xf]
    %v507 = vld [vmem:[#allocation9 + $0x98] sm:$0xf]
    %v508 = vld [vmem:[#allocation9 + $0x9c] sm:$0xf]
    %v509 = vld [vmem:[#allocation9 + $0xa0] sm:$0xf]
    %v510 = vld [vmem:[#allocation9 + $0xa4] sm:$0xf]
    %v511 = vld [vmem:[#allocation9 + $0xa8] sm:$0xf]
    %v512 = vld [vmem:[#allocation9 + $0xac] sm:$0xf]
    %v513 = vld [vmem:[#allocation9 + $0xb0] sm:$0xf]
    %v514 = vld [vmem:[#allocation9 + $0xb4] sm:$0xf]
    %v515 = vld [vmem:[#allocation9 + $0xb8] sm:$0xf]
    %v516 = vld [vmem:[#allocation9 + $0xbc] sm:$0xf]
    %v517 = vlaneseq
    %v518 = vshrl.u32 %v517, 7
    %v519 = vsub.s32 0, %v518
    %v520 = vrot.slane %v91, %v519
    %v569 = vunpack.c.l.b16 %v469
    %v570 = vunpack.c.l.b16 %v470
    %v571 = vunpack.c.l.b16 %v471
    %v572 = vunpack.c.l.b16 %v472
    %v573 = vunpack.c.l.b16 %v473
    %v574 = vunpack.c.l.b16 %v474
    %v575 = vunpack.c.l.b16 %v475
    %v576 = vunpack.c.l.b16 %v476
    %v577 = vunpack.c.l.b16 %v477
    %v578 = vunpack.c.l.b16 %v478
    %v579 = vunpack.c.l.b16 %v479
    %v580 = vunpack.c.l.b16 %v480
    %v581 = vunpack.c.l.b16 %v481
    %v582 = vunpack.c.l.b16 %v482
    %v583 = vunpack.c.l.b16 %v483
    %v584 = vunpack.c.l.b16 %v484
    %v585 = vunpack.c.l.b16 %v485
    %v586 = vunpack.c.l.b16 %v486
    %v587 = vunpack.c.l.b16 %v487
    %v588 = vunpack.c.l.b16 %v488
    %v589 = vunpack.c.l.b16 %v489
    %v590 = vunpack.c.l.b16 %v490
    %v591 = vunpack.c.l.b16 %v491
    %v592 = vunpack.c.l.b16 %v492
    %v593 = vunpack.c.l.b16 %v493
    %v594 = vunpack.c.l.b16 %v494
    %v595 = vunpack.c.l.b16 %v495
    %v596 = vunpack.c.l.b16 %v496
    %v597 = vunpack.c.l.b16 %v497
    %v598 = vunpack.c.l.b16 %v498
    %v599 = vunpack.c.l.b16 %v499
    %v600 = vunpack.c.l.b16 %v500
    %v601 = vunpack.c.l.b16 %v501
    %v602 = vunpack.c.l.b16 %v502
    %v603 = vunpack.c.l.b16 %v503
    %v604 = vunpack.c.l.b16 %v504
    %v605 = vunpack.c.l.b16 %v505
    %v606 = vunpack.c.l.b16 %v506
    %v607 = vunpack.c.l.b16 %v507
    %v608 = vunpack.c.l.b16 %v508
    %v609 = vunpack.c.l.b16 %v509
    %v610 = vunpack.c.l.b16 %v510
    %v611 = vunpack.c.l.b16 %v511
    %v612 = vunpack.c.l.b16 %v512
    %v613 = vunpack.c.l.b16 %v513
    %v614 = vunpack.c.l.b16 %v514
    %v615 = vunpack.c.l.b16 %v515
    %v616 = vunpack.c.l.b16 %v516
    %v617 = vpack.c.b16 %v570, %v569
    %v618 = vpack.c.b16 %v572, %v571
    %v619 = vpack.c.b16 %v574, %v573
    %v620 = vpack.c.b16 %v576, %v575
    %v621 = vpack.c.b16 %v578, %v577
    %v622 = vpack.c.b16 %v580, %v579
    %v623 = vpack.c.b16 %v582, %v581
    %v624 = vpack.c.b16 %v584, %v583
    %v625 = vpack.c.b16 %v586, %v585
    %v626 = vpack.c.b16 %v588, %v587
    %v627 = vpack.c.b16 %v590, %v589
    %v628 = vpack.c.b16 %v592, %v591
    %v629 = vpack.c.b16 %v594, %v593
    %v630 = vpack.c.b16 %v596, %v595
    %v631 = vpack.c.b16 %v598, %v597
    %v632 = vpack.c.b16 %v600, %v599
    %v633 = vpack.c.b16 %v602, %v601
    %v634 = vpack.c.b16 %v604, %v603
    %v635 = vpack.c.b16 %v606, %v605
    %v636 = vpack.c.b16 %v608, %v607
    %v637 = vpack.c.b16 %v610, %v609
    %v638 = vpack.c.b16 %v612, %v611
    %v639 = vpack.c.b16 %v614, %v613
    %v640 = vpack.c.b16 %v616, %v615
    %665 = vmatprep.subr.bf16.mxu0 0
    %666 = vmatpush1.bf16.msra.mxu0 %v624
    %667 = vmatprep.subr.bf16.mxu0 0
    %668 = vmatpush1.bf16.msra.mxu0 %v623
    %669 = vmatprep.subr.bf16.mxu0 0
    %670 = vmatpush1.bf16.msra.mxu0 %v622
    %671 = vmatprep.subr.bf16.mxu0 0
    %672 = vmatpush1.bf16.msra.mxu0 %v621
    %673 = vmatprep.subr.bf16.mxu0 0
    %674 = vmatpush1.bf16.msra.mxu0 %v620
    %675 = vmatprep.subr.bf16.mxu0 0
    %676 = vmatpush1.bf16.msra.mxu0 %v619
    %677 = vmatprep.subr.bf16.mxu0 0
    %678 = vmatpush1.bf16.msra.mxu0 %v618
    %679 = vmatprep.subr.bf16.mxu0 0
    %680 = vmatpush1.bf16.msra.mxu0 %v617
    %681 = vmatprep.subr.bf16.mxu0 0
    %682 = vmatpush2.bf16.msra.mxu0 %v632
    %683 = vmatprep.subr.bf16.mxu0 0
    %684 = vmatpush2.bf16.msra.mxu0 %v631
    %685 = vmatprep.subr.bf16.mxu0 0
    %686 = vmatpush2.bf16.msra.mxu0 %v630
    %687 = vmatprep.subr.bf16.mxu0 0
    %688 = vmatpush2.bf16.msra.mxu0 %v629
    %689 = vmatprep.subr.bf16.mxu0 0
    %690 = vmatpush2.bf16.msra.mxu0 %v628
    %691 = vmatprep.subr.bf16.mxu0 0
    %692 = vmatpush2.bf16.msra.mxu0 %v627
    %693 = vmatprep.subr.bf16.mxu0 0
    %694 = vmatpush2.bf16.msra.mxu0 %v626
    %695 = vmatprep.subr.bf16.mxu0 0
    %696 = vmatpush2.bf16.msra.mxu0 %v625
    %697 = vmatprep.mubr.bf16.mxu0 %v464
    %698 = vmatmul.mubr.bf16.gmra.mxu0 %v463
    %v699 = vpop.f32.mrf.mxu0
    %v700 = vadd.f32 %v520, %v699
    %v701 = vpop.f32.mrf.mxu0
    %v702 = vpop.f32.mrf.mxu0
    %v703 = vadd.f32 %v520, %v702
    %v704 = vpop.f32.mrf.mxu0
    %705 = vmatprep.mubr.bf16.mxu0 %v467
    %706 = vmatmul.mubr.bf16.gmra.mxu0 %v466
    %v707 = vpop.f32.mrf.mxu0
    %v708 = vadd.f32 %v520, %v707
    %v709 = vpop.f32.mrf.mxu0
    %v710 = vpop.f32.mrf.mxu0
    %v711 = vadd.f32 %v520, %v710
    %v712 = vpop.f32.mrf.mxu0
    %713 = vdwg.mxu0
    %714 = vmatprep.subr.bf16.mxu0 0
    %715 = vmatpush1.bf16.msra.mxu0 %v640
    %716 = vmatprep.subr.bf16.mxu0 0
    %717 = vmatpush1.bf16.msra.mxu0 %v639
    %718 = vmatprep.subr.bf16.mxu0 0
    %719 = vmatpush1.bf16.msra.mxu0 %v638
    %720 = vmatprep.subr.bf16.mxu0 0
    %721 = vmatpush1.bf16.msra.mxu0 %v637
    %722 = vmatprep.subr.bf16.mxu0 0
    %723 = vmatpush1.bf16.msra.mxu0 %v636
    %724 = vmatprep.subr.bf16.mxu0 0
    %725 = vmatpush1.bf16.msra.mxu0 %v635
    %726 = vmatprep.subr.bf16.mxu0 0
    %727 = vmatpush1.bf16.msra.mxu0 %v634
    %728 = vmatprep.subr.bf16.mxu0 0
    %729 = vmatpush1.bf16.msra.mxu0 %v633
    %730 = vmatprep.subr.bf16.mxu0 0
    %731 = vmatpush2.bf16.msra.mxu0 0
    %732 = vmatprep.subr.bf16.mxu0 0
    %733 = vmatpush2.bf16.msra.mxu0 0
    %734 = vmatprep.subr.bf16.mxu0 0
    %735 = vmatpush2.bf16.msra.mxu0 0
    %736 = vmatprep.subr.bf16.mxu0 0
    %737 = vmatpush2.bf16.msra.mxu0 0
    %738 = vmatprep.subr.bf16.mxu0 0
    %739 = vmatpush2.bf16.msra.mxu0 0
    %740 = vmatprep.subr.bf16.mxu0 0
    %741 = vmatpush2.bf16.msra.mxu0 0
    %742 = vmatprep.subr.bf16.mxu0 0
    %743 = vmatpush2.bf16.msra.mxu0 0
    %744 = vmatprep.subr.bf16.mxu0 0
    %745 = vmatpush2.bf16.msra.mxu0 0
    %746 = vmatprep.mubr.bf16.mxu0 0
    %747 = vmatmul.mubr.bf16.gmra.mxu0 %v465
    %v748 = vpop.f32.mrf.mxu0
    %v749 = vadd.f32 %v700, %v748
    %v750 = vpop.f32.mrf.mxu0
    %v751 = vpop.f32.mrf.mxu0
    %v752 = vadd.f32 %v703, %v751
    %v753 = vpop.f32.mrf.mxu0
    %754 = vmatprep.mubr.bf16.mxu0 0
    %755 = vmatmul.mubr.bf16.gmra.mxu0 %v468
    %v756 = vpop.f32.mrf.mxu0
    %v757 = vadd.f32 %v708, %v756
    %v758 = vpop.f32.mrf.mxu0
    %v759 = vpop.f32.mrf.mxu0
    %v760 = vadd.f32 %v711, %v759
    %v761 = vpop.f32.mrf.mxu0
    %762 = vdwg.mxu0
    %v763 = vadd.f32 %v749, %v752
    %v764 = vadd.f32 %v763, %v757
    %v765 = vadd.f32 %v764, %v760
    %v766 = vrot.slane %v765, 4
    %v767 = vadd.f32 %v765, %v766
    %v768 = vrot.slane %v767, 2
    %v769 = vadd.f32 %v767, %v768
    %v770 = vrot.slane %v769, 1
    %v771 = vadd.f32 %v769, %v770
    %772 = vrot.lane.b32.xlu0 %v771, 8
    %v773 = vpop.permute.xlu0 %772
    %v774 = vadd.f32 %v771, %v773
    %775 = vrot.lane.b32.xlu0 %v774, 16
    %v776 = vpop.permute.xlu0 %775
    %v777 = vadd.f32 %v774, %v776
    %778 = vrot.lane.b32.xlu0 %v777, 32
    %v779 = vpop.permute.xlu0 %778
    %v780 = vadd.f32 %v777, %v779
    %781 = vrot.lane.b32.xlu0 %v780, 64
    %v782 = vpop.permute.xlu0 %781
    %v783 = vadd.f32 %v780, %v782
    %v784 = vmul.f32 %v783, 0.001953125
    %v785 = vlaneseq
    %v786 = vshrl.u32 %v785, 7
    %v787 = vsub.s32 0, %v786
    %v788 = vrot.slane %v784, %v787
    %v789 = vsub.f32 %v749, %v788
    %v790 = vsub.f32 %v752, %v788
    %v791 = vsub.f32 %v757, %v788
    %v792 = vsub.f32 %v760, %v788
    %v793 = vmul.f32 %v789, %v789
    %v794 = vmul.f32 %v790, %v790
    %v795 = vmul.f32 %v791, %v791
    %v796 = vmul.f32 %v792, %v792
    %v797 = vadd.f32 %v793, %v794
    %v798 = vadd.f32 %v797, %v795
    %v799 = vadd.f32 %v798, %v796
    %v800 = vrot.slane %v799, 4
    %v801 = vadd.f32 %v799, %v800
    %v802 = vrot.slane %v801, 2
    %v803 = vadd.f32 %v801, %v802
    %v804 = vrot.slane %v803, 1
    %v805 = vadd.f32 %v803, %v804
    %806 = vrot.lane.b32.xlu0 %v805, 8
    %v807 = vpop.permute.xlu0 %806
    %v808 = vadd.f32 %v805, %v807
    %809 = vrot.lane.b32.xlu0 %v808, 16
    %v810 = vpop.permute.xlu0 %809
    %v811 = vadd.f32 %v808, %v810
    %812 = vrot.lane.b32.xlu0 %v811, 32
    %v813 = vpop.permute.xlu0 %812
    %v814 = vadd.f32 %v811, %v813
    %815 = vrot.lane.b32.xlu0 %v814, 64
    %v816 = vpop.permute.xlu0 %815
    %v817 = vadd.f32 %v814, %v816
    %v818 = vmul.f32 %v817, 0.001953125
    %v819 = vadd.f32 %v818, 1e-05
    %v820 = vrsqrt.pop %v819
    %v821 = vlaneseq
    %v822 = vshrl.u32 %v821, 7
    %v823 = vsub.s32 0, %v822
    %v824 = vrot.slane %v820, %v823
    %v825 = vmul.f32 %v789, %v824
    %v826 = vmul.f32 %v790, %v824
    %v827 = vmul.f32 %v791, %v824
    %v828 = vmul.f32 %v792, %v824
    %v829 = vlaneseq
    %v830 = vshrl.u32 %v829, 7
    %v831 = vsub.s32 0, %v830
    %v832 = vrot.slane %v92, %v831
    %v833 = vmul.f32 %v825, %v832
    %v834 = vmul.f32 %v826, %v832
    %v835 = vmul.f32 %v827, %v832
    %v836 = vmul.f32 %v828, %v832
    %v837 = vlaneseq
    %v838 = vshrl.u32 %v837, 7
    %v839 = vsub.s32 0, %v838
    %v840 = vrot.slane %v93, %v839
    %v841 = vadd.f32 %v833, %v840
    %v842 = vadd.f32 %v834, %v840
    %v843 = vadd.f32 %v835, %v840
    %v844 = vadd.f32 %v836, %v840
    %v845 = vpack.c.bf16 %v96, %v95
    %v846 = vpack.c.bf16 %v98, %v97
    %v847 = vld [vmem:[#allocation10] sm:$0xf]
    %v848 = vld [vmem:[#allocation10 + $0x4] sm:$0xf]
    %v849 = vld [vmem:[#allocation10 + $0x8] sm:$0xf]
    %v850 = vld [vmem:[#allocation10 + $0xc] sm:$0xf]
    %v851 = vld [vmem:[#allocation10 + $0x10] sm:$0xf]
    %v852 = vld [vmem:[#allocation10 + $0x14] sm:$0xf]
    %v853 = vld [vmem:[#allocation10 + $0x18] sm:$0xf]
    %v854 = vld [vmem:[#allocation10 + $0x1c] sm:$0xf]
    %v855 = vlaneseq
    %v856 = vshrl.u32 %v855, 7
    %v857 = vsub.s32 0, %v856
    %v858 = vrot.slane %v94, %v857
    %v867 = vunpack.c.l.b16 %v847
    %v868 = vunpack.c.l.b16 %v848
    %v869 = vunpack.c.l.b16 %v849
    %v870 = vunpack.c.l.b16 %v850
    %v871 = vunpack.c.l.b16 %v851
    %v872 = vunpack.c.l.b16 %v852
    %v873 = vunpack.c.l.b16 %v853
    %v874 = vunpack.c.l.b16 %v854
    %v875 = vpack.c.b16 %v868, %v867
    %v876 = vpack.c.b16 %v870, %v869
    %v877 = vpack.c.b16 %v872, %v871
    %v878 = vpack.c.b16 %v874, %v873
    %v884 = vsel %vm119, %v845, 0
    %v887 = vsel %vm119, %v846, 0
    %889 = vmatprep.subr.bf16.mxu0 0
    %890 = vmatpush1.bf16.msra.mxu0 0
    %891 = vmatprep.subr.bf16.mxu0 0
    %892 = vmatpush1.bf16.msra.mxu0 0
    %893 = vmatprep.subr.bf16.mxu0 0
    %894 = vmatpush1.bf16.msra.mxu0 0
    %895 = vmatprep.subr.bf16.mxu0 0
    %896 = vmatpush1.bf16.msra.mxu0 0
    %897 = vmatprep.subr.bf16.mxu0 0
    %898 = vmatpush1.bf16.msra.mxu0 %v878
    %899 = vmatprep.subr.bf16.mxu0 0
    %900 = vmatpush1.bf16.msra.mxu0 %v877
    %901 = vmatprep.subr.bf16.mxu0 0
    %902 = vmatpush1.bf16.msra.mxu0 %v876
    %903 = vmatprep.subr.bf16.mxu0 0
    %904 = vmatpush1.bf16.msra.mxu0 %v875
    %905 = vmatprep.subr.bf16.mxu0 0
    %906 = vmatpush2.bf16.msra.mxu0 0
    %907 = vmatprep.subr.bf16.mxu0 0
    %908 = vmatpush2.bf16.msra.mxu0 0
    %909 = vmatprep.subr.bf16.mxu0 0
    %910 = vmatpush2.bf16.msra.mxu0 0
    %911 = vmatprep.subr.bf16.mxu0 0
    %912 = vmatpush2.bf16.msra.mxu0 0
    %913 = vmatprep.subr.bf16.mxu0 0
    %914 = vmatpush2.bf16.msra.mxu0 0
    %915 = vmatprep.subr.bf16.mxu0 0
    %916 = vmatpush2.bf16.msra.mxu0 0
    %917 = vmatprep.subr.bf16.mxu0 0
    %918 = vmatpush2.bf16.msra.mxu0 0
    %919 = vmatprep.subr.bf16.mxu0 0
    %920 = vmatpush2.bf16.msra.mxu0 0
    %921 = vmatprep.mubr.bf16.mxu0 0
    %922 = vmatmul.mubr.bf16.gmra.mxu0 %v884
    %v923 = vpop.f32.mrf.mxu0
    %v924 = vadd.f32 %v858, %v923
    %v925 = vpop.f32.mrf.mxu0
    %v926 = vpop.f32.mrf.mxu0
    %v927 = vadd.f32 %v858, %v926
    %v928 = vpop.f32.mrf.mxu0
    %929 = vmatprep.mubr.bf16.mxu0 0
    %930 = vmatmul.mubr.bf16.gmra.mxu0 %v887
    %v931 = vpop.f32.mrf.mxu0
    %v932 = vadd.f32 %v858, %v931
    %v933 = vpop.f32.mrf.mxu0
    %v934 = vpop.f32.mrf.mxu0
    %v935 = vadd.f32 %v858, %v934
    %v936 = vpop.f32.mrf.mxu0
    %937 = vdwg.mxu0
    %v938 = vadd.f32 %v841, %v924
    %v939 = vadd.f32 %v842, %v927
    %v940 = vadd.f32 %v843, %v932
    %v941 = vadd.f32 %v844, %v935
    %v942 = vmax.f32 %v938, 0.0
    %v943 = vmax.f32 %v939, 0.0
    %v944 = vmax.f32 %v940, 0.0
    %v945 = vmax.f32 %v941, 0.0
    %946 = vst [vmem:[#allocation13] sm:$0xff] %v942
    %947 = vst [vmem:[#allocation13 + $0x8] sm:$0xff] %v943
    %948 = vst [vmem:[#allocation13 + $0x10] sm:$0xff] %v944
    %949 = vst [vmem:[#allocation13 + $0x18] sm:$0xff] %v945
    // Predicated region
    $region42: #{tpu_custom_call.1} parent=1 // pred_check
      _
    $region43: #{tpu_custom_call.1} parent=1 // pred_check_branch
      %951 = sbr.rel (0) target = $region45
    $region44: #{tpu_custom_call.1} parent=1 // pred_region
      %s953 = ssub.s32 512, 512
      %954 = vsyncadd [#allocation6], %s953
      %s955 = sshll.u32 [#allocation13], 4
      %s956 = int_to_ptr.vmem [resolvable:$true] %s955
      %961 = dma.vmem_to_hbm [thread:$0]  %s956, 512, %s5, [#allocation6], 128, 128, 8
    $region45: #{tpu_custom_call.1} parent=1 // pred_fallthru
      _
    // Predicated region
    $region46: #{tpu_custom_call.1} parent=1 // pred_check
      _
    $region47: #{tpu_custom_call.1} parent=1 // pred_check_branch
      %963 = sbr.rel (0) target = $region49
    $region48: #{tpu_custom_call.1} parent=1 // pred_region
      %964 = dma.done [#allocation6], 512
    $region49: #{tpu_custom_call.1} parent=1 // pred_fallthru
      _
    %965 = vsyncpa [#allocation5], 1
    %966 = vsyncpa [#allocation8], 1
    %967 = vsyncpa [#allocation11], 1
    %968 = vsyncpa [#allocation6], 1

</llo_original>
